<compile_context>
chip_gen: v5e
topology: v5e:2x2
jax: 0.10.0
libtpu: 0.0.40
codegen_flags: <defaults>
</compile_context>

<pallas_src>
import functools

import jax
import jax.numpy as jnp
from jax.experimental import pallas as pl
from jax.experimental.pallas import tpu as pltpu

LANE = 128
_MIB = 1024 * 1024


def _round_up(a, b):
    return (a + b - 1) // b * b


# ---------------------------------------------------------------------------
# generation-aware configuration
# ---------------------------------------------------------------------------
def _tpu_generation():
    """Best-effort TPU generation detection ('v5e' / 'v6e' / 'v7x' / 'unknown')."""
    try:
        kind = jax.devices()[0].device_kind.lower()
    except Exception:
        return "unknown"
    if "v7" in kind:
        return "v7x"
    if "v6" in kind:
        return "v6e"
    if "v5" in kind:
        return "v5e"
    return "unknown"


_GEN_CFG = {
    #            max batch tile | scoped-VMEM cap | want >=2 grid steps (2 TCs)
    "v5e":     dict(max_tb=256, vmem_cap=64 * _MIB, multi_step=False),
    "v6e":     dict(max_tb=512, vmem_cap=96 * _MIB, multi_step=False),
    "v7x":     dict(max_tb=512, vmem_cap=48 * _MIB, multi_step=True),
    "unknown": dict(max_tb=256, vmem_cap=32 * _MIB, multi_step=False),
}


def _gen_config(gen):
    cfg = dict(_GEN_CFG.get(gen, _GEN_CFG["unknown"]))
    try:  # clamp to the physical VMEM of whatever we are actually running on
        cfg["vmem_cap"] = min(
            cfg["vmem_cap"],
            int(pltpu.get_tpu_info().vmem_capacity_bytes) * 3 // 4)
    except Exception:
        pass
    return cfg


# ---------------------------------------------------------------------------
# kernel
# ---------------------------------------------------------------------------
def nf_net_kernel(x_ref, w_in_ref, b_in_ref, w1_ref, b1_ref,
                  w_out_ref, b_out_ref, o_ref, *, compute_dtype, act_dtype):
    """One batch tile: out = tanh(tanh(x@Win+bin)@W1+b1) @ Wout + bout."""
    x = x_ref[...].astype(compute_dtype)              # cast in-kernel (no wrapper copy)
    h = jnp.dot(x, w_in_ref[...], preferred_element_type=jnp.float32)
    h = jnp.tanh(h.astype(act_dtype) + b_in_ref[...])  # bias + tanh in act_dtype
    h = jnp.dot(h.astype(compute_dtype), w1_ref[...],
                preferred_element_type=jnp.float32)
    h = jnp.tanh(h.astype(act_dtype) + b1_ref[...])
    y = jnp.dot(h.astype(compute_dtype), w_out_ref[...],
                preferred_element_type=jnp.float32)
    o_ref[...] = (y + b_out_ref[...]).astype(o_ref.dtype)   # output bias in f32


# ---------------------------------------------------------------------------
# one-time parameter preparation (hoisted out of the per-call path)
# ---------------------------------------------------------------------------
def prepare_params(params, *, compute_dtype=jnp.bfloat16, act_dtype=None):
    """Pad + cast weights ONCE.  Hidden dim is zero-padded to 128 lanes
    (provably inert); the i/o feature dim is left unpadded so x needs no
    per-call pad and the output needs no per-call slice."""
    gen = _tpu_generation()
    if act_dtype is None:
        # v6e / v7x: bf16-native VPU & EUP -> bf16 bias+tanh.  v5e / unknown: f32.
        act_dtype = compute_dtype if gen in ("v6e", "v7x") else jnp.float32

    dim, hid = params["w_in"].shape
    hid_p = _round_up(hid, LANE)

    def pad_to(a, rows, cols):
        return jnp.pad(a, ((0, rows - a.shape[0]), (0, cols - a.shape[1])))

    prepared = dict(
        w_in=pad_to(params["w_in"], dim, hid_p).astype(compute_dtype),    # (dim, hid_p)
        b_in=pad_to(params["b_in"], 1, hid_p).astype(act_dtype),          # (1, hid_p)
        w1=pad_to(params["w1"], hid_p, hid_p).astype(compute_dtype),      # (hid_p, hid_p)
        b1=pad_to(params["b1"], 1, hid_p).astype(act_dtype),              # (1, hid_p)
        w_out=pad_to(params["w_out"], hid_p, dim).astype(compute_dtype),  # (hid_p, dim)
        b_out=params["b_out"].astype(jnp.float32),                        # (1, dim)
    )
    meta = dict(gen=gen, dim=dim, hid=hid, hid_p=hid_p,
                compute_dtype=compute_dtype, act_dtype=act_dtype)
    return prepared, meta


# ---------------------------------------------------------------------------
# wrapper
# ---------------------------------------------------------------------------
def _resident_spec(shape, single_buffer):
    """Constant-index weight/bias spec: fetched once, VMEM-resident."""
    if single_buffer:
        try:
            return pl.BlockSpec(shape, lambda i: (0, 0),
                                pipeline_mode=pl.Buffered(1))
        except TypeError:   # older jax without pipeline_mode on BlockSpec
            pass
    return pl.BlockSpec(shape, lambda i: (0, 0))


def _pick_tb(batch, *, max_tb, multi_step):
    """Padding-aware batch tile: multiple of 8, never larger than the batch."""
    if batch <= 8:
        return batch                        # block == full array dim (allowed)
    if batch <= 128:
        tb = (batch // 8) * 8
        if multi_step and tb >= 16:         # v7x: give both TensorCores a step
            tb = max(8, (((batch + 1) // 2) // 8) * 8)
        return tb
    best = None
    for t in (512, 256, 128):
        if t > max_tb or t > batch:
            continue
        steps = pl.cdiv(batch, t)
        waste = steps * t - batch           # dead padded rows in the last tile
        key = (waste, 1 if (multi_step and steps < 2) else 0, -t)
        if best is None or key < best[0]:
            best = (key, t)
    return best[1]


def nf_net_forward(x, prepared, meta, *, out_dtype=None):
    """x: (B, dim) -> (B, dim).  Use `prepared, meta = prepare_params(params)`."""
    B, dim = x.shape
    assert dim == meta["dim"], (dim, meta["dim"])
    hid_p = meta["hid_p"]
    compute_dtype = meta["compute_dtype"]
    act_dtype = meta["act_dtype"]
    if out_dtype is None:
        out_dtype = x.dtype     # pass jnp.bfloat16 to halve output store traffic

    cfg = _gen_config(meta["gen"])
    tb = _pick_tb(B, max_tb=cfg["max_tb"], multi_step=cfg["multi_step"])
    grid = (pl.cdiv(B, tb),)

    # VMEM budget: resident weights/biases, double-buffered x/out tiles, and
    # headroom for the f32 (tb, hid_p) intermediates Mosaic may spill.
    csz = jnp.dtype(compute_dtype).itemsize
    asz = jnp.dtype(act_dtype).itemsize
    weight_bytes = ((dim * hid_p + hid_p * hid_p + hid_p * dim) * csz
                    + 2 * hid_p * asz + dim * 4)
    io_bytes = 2 * tb * dim * (jnp.dtype(x.dtype).itemsize
                               + jnp.dtype(out_dtype).itemsize)
    act_bytes = 2 * tb * hid_p * 4
    est = weight_bytes + io_bytes + act_bytes
    vmem_limit = int(min(cfg["vmem_cap"], max(32 * _MIB, 2 * est)))

    kernel = functools.partial(nf_net_kernel,
                               compute_dtype=compute_dtype,
                               act_dtype=act_dtype)

    def run(single_buffer_weights):
        in_specs = [
            pl.BlockSpec((tb, dim), lambda i: (i, 0)),                # x batch tile
            _resident_spec((dim, hid_p), single_buffer_weights),      # w_in
            _resident_spec((1, hid_p), single_buffer_weights),        # b_in
            _resident_spec((hid_p, hid_p), single_buffer_weights),    # w1
            _resident_spec((1, hid_p), single_buffer_weights),        # b1
            _resident_spec((hid_p, dim), single_buffer_weights),      # w_out
            _resident_spec((1, dim), single_buffer_weights),          # b_out
        ]
        return pl.pallas_call(
            kernel,
            out_shape=jax.ShapeDtypeStruct((B, dim), out_dtype),
            grid=grid,
            in_specs=in_specs,
            out_specs=pl.BlockSpec((tb, dim), lambda i: (i, 0)),
            compiler_params=pltpu.CompilerParams(
                dimension_semantics=("parallel",),
                vmem_limit_bytes=vmem_limit,
            ),
        )(x, prepared["w_in"], prepared["b_in"], prepared["w1"],
          prepared["b1"], prepared["w_out"], prepared["b_out"])

    try:
        return run(True)
    except Exception:
        # Fallback if this jax/Mosaic build rejects single-buffered inputs.
        return run(False)


def init_params(key, dim, hid):
    """Deterministic init mimicking nn.Linear (uniform(-1/sqrt(fan_in), +))."""
    ks = jax.random.split(key, 6)

    def lin(kw, kb, fan_in, fan_out):
        bound = 1.0 / jnp.sqrt(fan_in)
        w = jax.random.uniform(kw, (fan_in, fan_out), jnp.float32, -bound, bound)
        b = jax.random.uniform(kb, (1, fan_out), jnp.float32, -bound, bound)
        return w, b

    w_in, b_in = lin(ks[0], ks[1], dim, hid)
    w1, b1 = lin(ks[2], ks[3], hid, hid)
    w_out, b_out = lin(ks[4], ks[5], hid, dim)
    return dict(w_in=w_in, b_in=b_in, w1=w1, b1=b1, w_out=w_out, b_out=b_out)


if __name__ == "__main__":
    key = jax.random.PRNGKey(0)
    k_x, k_p, k_x2 = jax.random.split(key, 3)

    batch, dim, hid = 8, 4, 32                  # NF_Net(n_hiddens=32, dim=4)
    # NOTE: at these tiny sizes almost every MXU pass is padding; real use
    # should stack many independent NF_Net rows into one call.
    x = jax.random.normal(k_x, (batch, dim), jnp.float32)
    params = init_params(k_p, dim, hid)
    prepared, meta = prepare_params(params)     # one-time pad/cast (hoisted)

    out = nf_net_forward(x, prepared, meta)
    jax.block_until_ready(out)
    assert out.shape == (batch, dim) and out.dtype == x.dtype

    def matched_ref(xv):                        # same dtypes as the kernel path
        cd, ad = meta["compute_dtype"], meta["act_dtype"]
        h = jnp.dot(xv.astype(cd), params["w_in"].astype(cd),
                    preferred_element_type=jnp.float32)
        h = jnp.tanh(h.astype(ad) + params["b_in"].astype(ad))
        h = jnp.dot(h.astype(cd), params["w1"].astype(cd),
                    preferred_element_type=jnp.float32)
        h = jnp.tanh(h.astype(ad) + params["b1"].astype(ad))
        return jnp.dot(h.astype(cd), params["w_out"].astype(cd),
                       preferred_element_type=jnp.float32) + params["b_out"]

    def f32_ref(xv):                            # full-precision reference
        h = jnp.tanh(xv @ params["w_in"] + params["b_in"])
        h = jnp.tanh(h @ params["w1"] + params["b1"])
        return h @ params["w_out"] + params["b_out"]

    assert jnp.allclose(out.astype(jnp.float32), matched_ref(x), atol=2e-2, rtol=2e-2)
    assert jnp.allclose(out.astype(jnp.float32), f32_ref(x), atol=1e-1, rtol=1e-1)

    # Ragged batch: exercises the partial last grid tile (no pad / slice copies).
    x2 = jax.random.normal(k_x2, (52, dim), jnp.float32)
    out2 = nf_net_forward(x2, prepared, meta)
    jax.block_until_ready(out2)
    assert out2.shape == (52, dim)
    assert jnp.allclose(out2.astype(jnp.float32), matched_ref(x2), atol=2e-2, rtol=2e-2)

    print("KERNEL_OK")
</pallas_src>

<mosaic_0001>
module attributes {stable_mosaic.version = 11 : i64} {
  func.func @nf_net_kernel(%arg0: i32, %arg1: memref<8x4xf32, #tpu.memory_space<vmem>>, %arg2: memref<4x128xbf16, #tpu.memory_space<vmem>>, %arg3: memref<1x128xf32, #tpu.memory_space<vmem>>, %arg4: memref<128x128xbf16, #tpu.memory_space<vmem>>, %arg5: memref<1x128xf32, #tpu.memory_space<vmem>>, %arg6: memref<128x4xbf16, #tpu.memory_space<vmem>>, %arg7: memref<1x4xf32, #tpu.memory_space<vmem>>, %arg8: memref<8x4xf32, #tpu.memory_space<vmem>>) attributes {dimension_semantics = [#tpu.dimension_semantics<parallel>], iteration_bounds = array<i64: 1>, scalar_prefetch = 0 : i64, scratch_operands = 0 : i64, tpu.core_type = #tpu.core_type<tc>, window_params = [{transform_indices = @transform_0, window_bounds = array<i64: 8, 4>}, {pipeline_mode = #tpu.pipeline_mode<synchronous>, transform_indices = @transform_1, window_bounds = array<i64: 4, 128>}, {pipeline_mode = #tpu.pipeline_mode<synchronous>, transform_indices = @transform_2, window_bounds = array<i64: 1, 128>}, {pipeline_mode = #tpu.pipeline_mode<synchronous>, transform_indices = @transform_3, window_bounds = array<i64: 128, 128>}, {pipeline_mode = #tpu.pipeline_mode<synchronous>, transform_indices = @transform_4, window_bounds = array<i64: 1, 128>}, {pipeline_mode = #tpu.pipeline_mode<synchronous>, transform_indices = @transform_5, window_bounds = array<i64: 128, 4>}, {pipeline_mode = #tpu.pipeline_mode<synchronous>, transform_indices = @transform_6, window_bounds = array<i64: 1, 4>}, {transform_indices = @transform_7, window_bounds = array<i64: 8, 4>}]} {
    %c0 = arith.constant 0 : index
    %c0_0 = arith.constant 0 : index
    %0 = vector.load %arg1[%c0, %c0_0] : memref<8x4xf32, #tpu.memory_space<vmem>>, vector<8x4xf32>
    %1 = arith.truncf %0 : vector<8x4xf32> to vector<8x4xbf16>
    %c0_1 = arith.constant 0 : index
    %c0_2 = arith.constant 0 : index
    %2 = vector.load %arg2[%c0_1, %c0_2] : memref<4x128xbf16, #tpu.memory_space<vmem>>, vector<4x128xbf16>
    %cst = arith.constant dense<0.000000e+00> : vector<8x128xf32>
    %3 = tpu.matmul %1, %2, %cst {dimension_numbers = #tpu.dot_dimension_numbers<[1], [0], [0], [1], [0, 0, 1, 1], [], []>} : vector<8x4xbf16>, vector<4x128xbf16>, vector<8x128xf32> -> vector<8x128xf32>
    %c0_3 = arith.constant 0 : index
    %c0_4 = arith.constant 0 : index
    %4 = vector.load %arg3[%c0_3, %c0_4] : memref<1x128xf32, #tpu.memory_space<vmem>>, vector<1x128xf32>
    %5 = vector.broadcast %4 : vector<1x128xf32> to vector<8x128xf32>
    %6 = arith.addf %3, %5 : vector<8x128xf32>
    %7 = math.tanh %6 : vector<8x128xf32>
    %8 = arith.truncf %7 : vector<8x128xf32> to vector<8x128xbf16>
    %c0_5 = arith.constant 0 : index
    %c0_6 = arith.constant 0 : index
    %9 = vector.load %arg4[%c0_5, %c0_6] : memref<128x128xbf16, #tpu.memory_space<vmem>>, vector<128x128xbf16>
    %cst_7 = arith.constant dense<0.000000e+00> : vector<8x128xf32>
    %10 = tpu.matmul %8, %9, %cst_7 {dimension_numbers = #tpu.dot_dimension_numbers<[1], [0], [0], [1], [0, 0, 1, 1], [], []>} : vector<8x128xbf16>, vector<128x128xbf16>, vector<8x128xf32> -> vector<8x128xf32>
    %c0_8 = arith.constant 0 : index
    %c0_9 = arith.constant 0 : index
    %11 = vector.load %arg5[%c0_8, %c0_9] : memref<1x128xf32, #tpu.memory_space<vmem>>, vector<1x128xf32>
    %12 = vector.broadcast %11 : vector<1x128xf32> to vector<8x128xf32>
    %13 = arith.addf %10, %12 : vector<8x128xf32>
    %14 = math.tanh %13 : vector<8x128xf32>
    %15 = arith.truncf %14 : vector<8x128xf32> to vector<8x128xbf16>
    %c0_10 = arith.constant 0 : index
    %c0_11 = arith.constant 0 : index
    %16 = vector.load %arg6[%c0_10, %c0_11] : memref<128x4xbf16, #tpu.memory_space<vmem>>, vector<128x4xbf16>
    %cst_12 = arith.constant dense<0.000000e+00> : vector<8x4xf32>
    %17 = tpu.matmul %15, %16, %cst_12 {dimension_numbers = #tpu.dot_dimension_numbers<[1], [0], [0], [1], [0, 0, 1, 1], [], []>} : vector<8x128xbf16>, vector<128x4xbf16>, vector<8x4xf32> -> vector<8x4xf32>
    %c0_13 = arith.constant 0 : index
    %c0_14 = arith.constant 0 : index
    %18 = vector.load %arg7[%c0_13, %c0_14] : memref<1x4xf32, #tpu.memory_space<vmem>>, vector<1x4xf32>
    %19 = vector.broadcast %18 : vector<1x4xf32> to vector<8x4xf32>
    %20 = arith.addf %17, %19 : vector<8x4xf32>
    %c0_15 = arith.constant 0 : index
    %c0_16 = arith.constant 0 : index
    %21 = vector.load %arg8[%c0_15, %c0_16] : memref<8x4xf32, #tpu.memory_space<vmem>>, vector<8x4xf32>
    tpu.vector_store %arg8[%c0_15, %c0_16], %20 {strides = array<i32>} : memref<8x4xf32, #tpu.memory_space<vmem>>, vector<8x4xf32>,
    return
  }
  func.func @transform_0(%arg0: i32) -> (i32, i32) {
    %c0_i32 = arith.constant 0 : i32
    %c0_i32_0 = arith.constant 0 : i32
    return %arg0, %c0_i32 : i32, i32
  }
  func.func @transform_1(%arg0: i32) -> (i32, i32) {
    %c0_i32 = arith.constant 0 : i32
    %c0_i32_0 = arith.constant 0 : i32
    %c0_i32_1 = arith.constant 0 : i32
    return %c0_i32, %c0_i32_0 : i32, i32
  }
  func.func @transform_2(%arg0: i32) -> (i32, i32) {
    %c0_i32 = arith.constant 0 : i32
    %c0_i32_0 = arith.constant 0 : i32
    %c0_i32_1 = arith.constant 0 : i32
    return %c0_i32, %c0_i32_0 : i32, i32
  }
  func.func @transform_3(%arg0: i32) -> (i32, i32) {
    %c0_i32 = arith.constant 0 : i32
    %c0_i32_0 = arith.constant 0 : i32
    %c0_i32_1 = arith.constant 0 : i32
    return %c0_i32, %c0_i32_0 : i32, i32
  }
  func.func @transform_4(%arg0: i32) -> (i32, i32) {
    %c0_i32 = arith.constant 0 : i32
    %c0_i32_0 = arith.constant 0 : i32
    %c0_i32_1 = arith.constant 0 : i32
    return %c0_i32, %c0_i32_0 : i32, i32
  }
  func.func @transform_5(%arg0: i32) -> (i32, i32) {
    %c0_i32 = arith.constant 0 : i32
    %c0_i32_0 = arith.constant 0 : i32
    %c0_i32_1 = arith.constant 0 : i32
    return %c0_i32, %c0_i32_0 : i32, i32
  }
  func.func @transform_6(%arg0: i32) -> (i32, i32) {
    %c0_i32 = arith.constant 0 : i32
    %c0_i32_0 = arith.constant 0 : i32
    %c0_i32_1 = arith.constant 0 : i32
    return %c0_i32, %c0_i32_0 : i32, i32
  }
  func.func @transform_7(%arg0: i32) -> (i32, i32) {
    %c0_i32 = arith.constant 0 : i32
    %c0_i32_0 = arith.constant 0 : i32
    return %arg0, %c0_i32 : i32, i32
  }
}

module attributes {stable_mosaic.version = 11 : i64} {
  func.func @nf_net_kernel(%arg0: i32, %arg1: memref<8x4xf32, #tpu.memory_space<vmem>>, %arg2: memref<4x128xbf16, #tpu.memory_space<vmem>>, %arg3: memref<1x128xf32, #tpu.memory_space<vmem>>, %arg4: memref<128x128xbf16, #tpu.memory_space<vmem>>, %arg5: memref<1x128xf32, #tpu.memory_space<vmem>>, %arg6: memref<128x4xbf16, #tpu.memory_space<vmem>>, %arg7: memref<1x4xf32, #tpu.memory_space<vmem>>, %arg8: memref<8x4xf32, #tpu.memory_space<vmem>>) attributes {dimension_semantics = [#tpu.dimension_semantics<parallel>], iteration_bounds = array<i64: 1>, scalar_prefetch = 0 : i64, scratch_operands = 0 : i64, tpu.core_type = #tpu.core_type<tc>, window_params = [{transform_indices = @transform_0, window_bounds = array<i64: 8, 4>}, {pipeline_mode = #tpu.pipeline_mode<synchronous>, transform_indices = @transform_1, window_bounds = array<i64: 4, 128>}, {pipeline_mode = #tpu.pipeline_mode<synchronous>, transform_indices = @transform_2, window_bounds = array<i64: 1, 128>}, {pipeline_mode = #tpu.pipeline_mode<synchronous>, transform_indices = @transform_3, window_bounds = array<i64: 128, 128>}, {pipeline_mode = #tpu.pipeline_mode<synchronous>, transform_indices = @transform_4, window_bounds = array<i64: 1, 128>}, {pipeline_mode = #tpu.pipeline_mode<synchronous>, transform_indices = @transform_5, window_bounds = array<i64: 128, 4>}, {pipeline_mode = #tpu.pipeline_mode<synchronous>, transform_indices = @transform_6, window_bounds = array<i64: 1, 4>}, {transform_indices = @transform_7, window_bounds = array<i64: 8, 4>}]} {
    %c0 = arith.constant 0 : index
    %c0_0 = arith.constant 0 : index
    %0 = vector.load %arg1[%c0, %c0_0] : memref<8x4xf32, #tpu.memory_space<vmem>>, vector<8x4xf32>
    %1 = arith.truncf %0 : vector<8x4xf32> to vector<8x4xbf16>
    %c0_1 = arith.constant 0 : index
    %c0_2 = arith.constant 0 : index
    %2 = vector.load %arg2[%c0_1, %c0_2] : memref<4x128xbf16, #tpu.memory_space<vmem>>, vector<4x128xbf16>
    %cst = arith.constant dense<0.000000e+00> : vector<8x128xf32>
    %3 = tpu.matmul %1, %2, %cst {dimension_numbers = #tpu.dot_dimension_numbers<[1], [0], [0], [1], [0, 0, 1, 1], [], []>} : vector<8x4xbf16>, vector<4x128xbf16>, vector<8x128xf32> -> vector<8x128xf32>
    %c0_3 = arith.constant 0 : index
    %c0_4 = arith.constant 0 : index
    %4 = vector.load %arg3[%c0_3, %c0_4] : memref<1x128xf32, #tpu.memory_space<vmem>>, vector<1x128xf32>
    %5 = vector.broadcast %4 : vector<1x128xf32> to vector<8x128xf32>
    %6 = arith.addf %3, %5 : vector<8x128xf32>
    %7 = math.tanh %6 : vector<8x128xf32>
    %8 = arith.truncf %7 : vector<8x128xf32> to vector<8x128xbf16>
    %c0_5 = arith.constant 0 : index
    %c0_6 = arith.constant 0 : index
    %9 = vector.load %arg4[%c0_5, %c0_6] : memref<128x128xbf16, #tpu.memory_space<vmem>>, vector<128x128xbf16>
    %cst_7 = arith.constant dense<0.000000e+00> : vector<8x128xf32>
    %10 = tpu.matmul %8, %9, %cst_7 {dimension_numbers = #tpu.dot_dimension_numbers<[1], [0], [0], [1], [0, 0, 1, 1], [], []>} : vector<8x128xbf16>, vector<128x128xbf16>, vector<8x128xf32> -> vector<8x128xf32>
    %c0_8 = arith.constant 0 : index
    %c0_9 = arith.constant 0 : index
    %11 = vector.load %arg5[%c0_8, %c0_9] : memref<1x128xf32, #tpu.memory_space<vmem>>, vector<1x128xf32>
    %12 = vector.broadcast %11 : vector<1x128xf32> to vector<8x128xf32>
    %13 = arith.addf %10, %12 : vector<8x128xf32>
    %14 = math.tanh %13 : vector<8x128xf32>
    %15 = arith.truncf %14 : vector<8x128xf32> to vector<8x128xbf16>
    %c0_10 = arith.constant 0 : index
    %c0_11 = arith.constant 0 : index
    %16 = vector.load %arg6[%c0_10, %c0_11] : memref<128x4xbf16, #tpu.memory_space<vmem>>, vector<128x4xbf16>
    %cst_12 = arith.constant dense<0.000000e+00> : vector<8x4xf32>
    %17 = tpu.matmul %15, %16, %cst_12 {dimension_numbers = #tpu.dot_dimension_numbers<[1], [0], [0], [1], [0, 0, 1, 1], [], []>} : vector<8x128xbf16>, vector<128x4xbf16>, vector<8x4xf32> -> vector<8x4xf32>
    %c0_13 = arith.constant 0 : index
    %c0_14 = arith.constant 0 : index
    %18 = vector.load %arg7[%c0_13, %c0_14] : memref<1x4xf32, #tpu.memory_space<vmem>>, vector<1x4xf32>
    %19 = vector.broadcast %18 : vector<1x4xf32> to vector<8x4xf32>
    %20 = arith.addf %17, %19 : vector<8x4xf32>
    %c0_15 = arith.constant 0 : index
    %c0_16 = arith.constant 0 : index
    %21 = vector.load %arg8[%c0_15, %c0_16] : memref<8x4xf32, #tpu.memory_space<vmem>>, vector<8x4xf32>
    tpu.vector_store %arg8[%c0_15, %c0_16], %20 {strides = array<i32>} : memref<8x4xf32, #tpu.memory_space<vmem>>, vector<8x4xf32>,
    return
  }
  func.func @transform_0(%arg0: i32) -> (i32, i32) {
    %c0_i32 = arith.constant 0 : i32
    %c0_i32_0 = arith.constant 0 : i32
    return %arg0, %c0_i32 : i32, i32
  }
  func.func @transform_1(%arg0: i32) -> (i32, i32) {
    %c0_i32 = arith.constant 0 : i32
    %c0_i32_0 = arith.constant 0 : i32
    %c0_i32_1 = arith.constant 0 : i32
    return %c0_i32, %c0_i32_0 : i32, i32
  }
  func.func @transform_2(%arg0: i32) -> (i32, i32) {
    %c0_i32 = arith.constant 0 : i32
    %c0_i32_0 = arith.constant 0 : i32
    %c0_i32_1 = arith.constant 0 : i32
    return %c0_i32, %c0_i32_0 : i32, i32
  }
  func.func @transform_3(%arg0: i32) -> (i32, i32) {
    %c0_i32 = arith.constant 0 : i32
    %c0_i32_0 = arith.constant 0 : i32
    %c0_i32_1 = arith.constant 0 : i32
    return %c0_i32, %c0_i32_0 : i32, i32
  }
  func.func @transform_4(%arg0: i32) -> (i32, i32) {
    %c0_i32 = arith.constant 0 : i32
    %c0_i32_0 = arith.constant 0 : i32
    %c0_i32_1 = arith.constant 0 : i32
    return %c0_i32, %c0_i32_0 : i32, i32
  }
  func.func @transform_5(%arg0: i32) -> (i32, i32) {
    %c0_i32 = arith.constant 0 : i32
    %c0_i32_0 = arith.constant 0 : i32
    %c0_i32_1 = arith.constant 0 : i32
    return %c0_i32, %c0_i32_0 : i32, i32
  }
  func.func @transform_6(%arg0: i32) -> (i32, i32) {
    %c0_i32 = arith.constant 0 : i32
    %c0_i32_0 = arith.constant 0 : i32
    %c0_i32_1 = arith.constant 0 : i32
    return %c0_i32, %c0_i32_0 : i32, i32
  }
  func.func @transform_7(%arg0: i32) -> (i32, i32) {
    %c0_i32 = arith.constant 0 : i32
    %c0_i32_0 = arith.constant 0 : i32
    return %arg0, %c0_i32 : i32, i32
  }
}

</mosaic_0001>

<llo_original>
// kernel: tpu_custom_call.1
$region0: #{tpu_custom_call.1}
  #allocation0 [shape = 'u32[]', space=smem, size = 0x4, offset = 0x4, fixed_abs, tag = 'smem constant byte address 0x4 - core index']
  #allocation1 [shape = 'u32[72,128]{1,0:T(1,128)}', space=vmem, size = 0x9000, scoped, tag = 'internal scratch']
  %s0 = inlined_call_operand.vmem [shape: f32[8,4], index: 0, kind: input, shape index: {}]
  %s1 = inlined_call_operand.vmem [shape: bf16[4,128], index: 1, kind: input, shape index: {}]
  %s2 = inlined_call_operand.vmem [shape: f32[1,128], index: 2, kind: input, shape index: {}]
  %s3 = inlined_call_operand.vmem [shape: bf16[128,128], index: 3, kind: input, shape index: {}]
  %s4 = inlined_call_operand.vmem [shape: f32[1,128], index: 4, kind: input, shape index: {}]
  %s5 = inlined_call_operand.vmem [shape: bf16[128,4], index: 5, kind: input, shape index: {}]
  %s6 = inlined_call_operand.vmem [shape: f32[1,4], index: 6, kind: input, shape index: {}]
  %s7 = inlined_call_operand.vmem [shape: f32[8,4], index: 7, kind: output, shape index: {}]
  %s8 = sld [smem:[#allocation0]]
  $region38: #{tpu_custom_call.1} parent=0
    _
  %s10 = ssub.s32 1, %s8
  %s11 = scalar_select 0, %s10, %s8
  // Predicated region
  $region2: #{tpu_custom_call.1} parent=0 // pred_check
    _
  $region3: #{tpu_custom_call.1} parent=0 // pred_check_branch
    %13 = sbr.rel (0) target = $region5
  $region4: #{tpu_custom_call.1} parent=0 // pred_region
    _
  $region5: #{tpu_custom_call.1} parent=0 // pred_fallthru
    _
  // Predicated region
  $region6: #{tpu_custom_call.1} parent=0 // pred_check
    _
  $region7: #{tpu_custom_call.1} parent=0 // pred_check_branch
    %15 = sbr.rel (0) target = $region9
  $region8: #{tpu_custom_call.1} parent=0 // pred_region
    _
  $region9: #{tpu_custom_call.1} parent=0 // pred_fallthru
    _
  // Predicated region
  $region10: #{tpu_custom_call.1} parent=0 // pred_check
    _
  $region11: #{tpu_custom_call.1} parent=0 // pred_check_branch
    %17 = sbr.rel (0) target = $region13
  $region12: #{tpu_custom_call.1} parent=0 // pred_region
    _
  $region13: #{tpu_custom_call.1} parent=0 // pred_fallthru
    _
  // Predicated region
  $region14: #{tpu_custom_call.1} parent=0 // pred_check
    _
  $region15: #{tpu_custom_call.1} parent=0 // pred_check_branch
    %19 = sbr.rel (0) target = $region17
  $region16: #{tpu_custom_call.1} parent=0 // pred_region
    _
  $region17: #{tpu_custom_call.1} parent=0 // pred_fallthru
    _
  // Predicated region
  $region18: #{tpu_custom_call.1} parent=0 // pred_check
    _
  $region19: #{tpu_custom_call.1} parent=0 // pred_check_branch
    %21 = sbr.rel (0) target = $region21
  $region20: #{tpu_custom_call.1} parent=0 // pred_region
    _
  $region21: #{tpu_custom_call.1} parent=0 // pred_fallthru
    _
  // Predicated region
  $region22: #{tpu_custom_call.1} parent=0 // pred_check
    _
  $region23: #{tpu_custom_call.1} parent=0 // pred_check_branch
    %23 = sbr.rel (0) target = $region25
  $region24: #{tpu_custom_call.1} parent=0 // pred_region
    _
  $region25: #{tpu_custom_call.1} parent=0 // pred_fallthru
    _
  // Predicated region
  $region26: #{tpu_custom_call.1} parent=0 // pred_check
    _
  $region27: #{tpu_custom_call.1} parent=0 // pred_check_branch
    %25 = sbr.rel (0) target = $region29
  $region28: #{tpu_custom_call.1} parent=0 // pred_region
    _
  $region29: #{tpu_custom_call.1} parent=0 // pred_fallthru
    _
  %v27 = vld [vmem:[%s0] sm:$0xff]
  %v28 = vpack.c.bf16 %v27, %v27
  %v29 = vld [vmem:[%s1] sm:$0x3]
  %v30 = vld [vmem:[%s2] sm:$0x1]
  %v32 = vperm.slane %v30, 0
  %vm34 = vcmask 31744
  %v36 = vsel %vm34, %v28, 0
  %vm38 = vcmask 1041408
  %v40 = vsel %vm38, %v29, 0
  %42 = vmatpush.bf16.msra.mxu0 0
  %43 = vmatpush.bf16.msra.mxu0 0
  %44 = vmatpush.bf16.msra.mxu0 0
  %45 = vmatpush.bf16.msra.mxu0 0
  %46 = vmatpush.bf16.msra.mxu0 0
  %47 = vmatpush.bf16.msra.mxu0 0
  %48 = vmatpush.bf16.msra.mxu0 0
  %49 = vmatpush.bf16.msra.mxu0 %v40
  %50 = vmatmul.bf16.gmra.mxu0 %v36
  %v51 = vpop.f32.mrf.mxu0
  %v52 = vadd.f32 %v32, %v51
  %v53 = vpop.f32.mrf.mxu0
  %54 = vdwg.mxu0
  %v55 = vtanh.pop %v52
  %v56 = vpack.c.bf16 %v55, %v55
  %v57 = vld [vmem:[%s3] sm:$0xf]
  %v58 = vld [vmem:[%s3 + $0x4] sm:$0xf]
  %v59 = vld [vmem:[%s3 + $0x8] sm:$0xf]
  %v60 = vld [vmem:[%s3 + $0xc] sm:$0xf]
  %v61 = vld [vmem:[%s3 + $0x10] sm:$0xf]
  %v62 = vld [vmem:[%s3 + $0x14] sm:$0xf]
  %v63 = vld [vmem:[%s3 + $0x18] sm:$0xf]
  %v64 = vld [vmem:[%s3 + $0x1c] sm:$0xf]
  %v65 = vld [vmem:[%s3 + $0x20] sm:$0xf]
  %v66 = vld [vmem:[%s3 + $0x24] sm:$0xf]
  %v67 = vld [vmem:[%s3 + $0x28] sm:$0xf]
  %v68 = vld [vmem:[%s3 + $0x2c] sm:$0xf]
  %v69 = vld [vmem:[%s3 + $0x30] sm:$0xf]
  %v70 = vld [vmem:[%s3 + $0x34] sm:$0xf]
  %v71 = vld [vmem:[%s3 + $0x38] sm:$0xf]
  %v72 = vld [vmem:[%s3 + $0x3c] sm:$0xf]
  %v73 = vld [vmem:[%s4] sm:$0x1]
  %v75 = vperm.slane %v73, 0
  %v93 = vunpack.c.l.b16 %v57
  %v94 = vunpack.c.l.b16 %v58
  %v95 = vunpack.c.l.b16 %v59
  %v96 = vunpack.c.l.b16 %v60
  %v97 = vunpack.c.l.b16 %v61
  %v98 = vunpack.c.l.b16 %v62
  %v99 = vunpack.c.l.b16 %v63
  %v100 = vunpack.c.l.b16 %v64
  %v101 = vunpack.c.l.b16 %v65
  %v102 = vunpack.c.l.b16 %v66
  %v103 = vunpack.c.l.b16 %v67
  %v104 = vunpack.c.l.b16 %v68
  %v105 = vunpack.c.l.b16 %v69
  %v106 = vunpack.c.l.b16 %v70
  %v107 = vunpack.c.l.b16 %v71
  %v108 = vunpack.c.l.b16 %v72
  %v109 = vpack.c.b16 %v94, %v93
  %v110 = vpack.c.b16 %v96, %v95
  %v111 = vpack.c.b16 %v98, %v97
  %v112 = vpack.c.b16 %v100, %v99
  %v113 = vpack.c.b16 %v102, %v101
  %v114 = vpack.c.b16 %v104, %v103
  %v115 = vpack.c.b16 %v106, %v105
  %v116 = vpack.c.b16 %v108, %v107
  %125 = vmatpush.bf16.msra.mxu0 %v116
  %126 = vmatpush.bf16.msra.mxu0 %v115
  %127 = vmatpush.bf16.msra.mxu0 %v114
  %128 = vmatpush.bf16.msra.mxu0 %v113
  %129 = vmatpush.bf16.msra.mxu0 %v112
  %130 = vmatpush.bf16.msra.mxu0 %v111
  %131 = vmatpush.bf16.msra.mxu0 %v110
  %132 = vmatpush.bf16.msra.mxu0 %v109
  %133 = vmatmul.bf16.gmra.mxu0 %v56
  %v134 = vpop.f32.mrf.mxu0
  %v135 = vadd.f32 %v75, %v134
  %v136 = vpop.f32.mrf.mxu0
  %137 = vdwg.mxu0
  %v138 = vtanh.pop %v135
  %v139 = vpack.c.bf16 %v138, %v138
  %v140 = vld [vmem:[%s5] sm:$0xf]
  %v141 = vld [vmem:[%s5 + $0x4] sm:$0xf]
  %v142 = vld [vmem:[%s5 + $0x8] sm:$0xf]
  %v143 = vld [vmem:[%s5 + $0xc] sm:$0xf]
  %v144 = vld [vmem:[%s5 + $0x10] sm:$0xf]
  %v145 = vld [vmem:[%s5 + $0x14] sm:$0xf]
  %v146 = vld [vmem:[%s5 + $0x18] sm:$0xf]
  %v147 = vld [vmem:[%s5 + $0x1c] sm:$0xf]
  %v148 = vld [vmem:[%s5 + $0x20] sm:$0xf]
  %v149 = vld [vmem:[%s5 + $0x24] sm:$0xf]
  %v150 = vld [vmem:[%s5 + $0x28] sm:$0xf]
  %v151 = vld [vmem:[%s5 + $0x2c] sm:$0xf]
  %v152 = vld [vmem:[%s5 + $0x30] sm:$0xf]
  %v153 = vld [vmem:[%s5 + $0x34] sm:$0xf]
  %v154 = vld [vmem:[%s5 + $0x38] sm:$0xf]
  %v155 = vld [vmem:[%s5 + $0x3c] sm:$0xf]
  %v156 = vld [vmem:[%s6] sm:$0x1]
  %v158 = vperm.slane %v156, 0
  %v176 = vunpack.c.l.b16 %v140
  %v177 = vunpack.c.l.b16 %v141
  %v178 = vunpack.c.l.b16 %v142
  %v179 = vunpack.c.l.b16 %v143
  %v180 = vunpack.c.l.b16 %v144
  %v181 = vunpack.c.l.b16 %v145
  %v182 = vunpack.c.l.b16 %v146
  %v183 = vunpack.c.l.b16 %v147
  %v184 = vunpack.c.l.b16 %v148
  %v185 = vunpack.c.l.b16 %v149
  %v186 = vunpack.c.l.b16 %v150
  %v187 = vunpack.c.l.b16 %v151
  %v188 = vunpack.c.l.b16 %v152
  %v189 = vunpack.c.l.b16 %v153
  %v190 = vunpack.c.l.b16 %v154
  %v191 = vunpack.c.l.b16 %v155
  %v192 = vpack.c.b16 %v177, %v176
  %v193 = vpack.c.b16 %v179, %v178
  %v194 = vpack.c.b16 %v181, %v180
  %v195 = vpack.c.b16 %v183, %v182
  %v196 = vpack.c.b16 %v185, %v184
  %v197 = vpack.c.b16 %v187, %v186
  %v198 = vpack.c.b16 %v189, %v188
  %v199 = vpack.c.b16 %v191, %v190
  %208 = vmatpush.bf16.msra.mxu0 %v199
  %209 = vmatpush.bf16.msra.mxu0 %v198
  %210 = vmatpush.bf16.msra.mxu0 %v197
  %211 = vmatpush.bf16.msra.mxu0 %v196
  %212 = vmatpush.bf16.msra.mxu0 %v195
  %213 = vmatpush.bf16.msra.mxu0 %v194
  %214 = vmatpush.bf16.msra.mxu0 %v193
  %215 = vmatpush.bf16.msra.mxu0 %v192
  %216 = vmatmul.bf16.gmra.mxu0 %v139
  %v217 = vpop.f32.mrf.mxu0
  %v218 = vadd.f32 %v158, %v217
  %v219 = vpop.f32.mrf.mxu0
  %220 = vdwg.mxu0
  %221 = vst.msk [vmem:[%s7] sm:$0xff] %vm34, %v218
  // Predicated region
  $region30: #{tpu_custom_call.1} parent=0 // pred_check
    _
  $region31: #{tpu_custom_call.1} parent=0 // pred_check_branch
    %223 = sbr.rel (0) target = $region33
  $region32: #{tpu_custom_call.1} parent=0 // pred_region
    _
  $region33: #{tpu_custom_call.1} parent=0 // pred_fallthru
    _
  // Predicated region
  $region34: #{tpu_custom_call.1} parent=0 // pred_check
    _
  $region35: #{tpu_custom_call.1} parent=0 // pred_check_branch
    %225 = sbr.rel (0) target = $region37
  $region36: #{tpu_custom_call.1} parent=0 // pred_region
    _
  $region37: #{tpu_custom_call.1} parent=0 // pred_fallthru
    _

// kernel: tpu_custom_call.1
$region0: #{tpu_custom_call.1}
  #allocation0 [shape = 'u32[]', space=smem, size = 0x4, offset = 0x4, fixed_abs, tag = 'smem constant byte address 0x4 - core index']
  #allocation1 [shape = 'u32[72,128]{1,0:T(1,128)}', space=vmem, size = 0x9000, scoped, tag = 'internal scratch']
  %s0 = inlined_call_operand.vmem [shape: f32[8,4], index: 0, kind: input, shape index: {}]
  %s1 = inlined_call_operand.vmem [shape: bf16[4,128], index: 1, kind: input, shape index: {}]
  %s2 = inlined_call_operand.vmem [shape: f32[1,128], index: 2, kind: input, shape index: {}]
  %s3 = inlined_call_operand.vmem [shape: bf16[128,128], index: 3, kind: input, shape index: {}]
  %s4 = inlined_call_operand.vmem [shape: f32[1,128], index: 4, kind: input, shape index: {}]
  %s5 = inlined_call_operand.vmem [shape: bf16[128,4], index: 5, kind: input, shape index: {}]
  %s6 = inlined_call_operand.vmem [shape: f32[1,4], index: 6, kind: input, shape index: {}]
  %s7 = inlined_call_operand.vmem [shape: f32[8,4], index: 7, kind: output, shape index: {}]
  %s8 = sld [smem:[#allocation0]]
  $region38: #{tpu_custom_call.1} parent=0
    _
  %s10 = ssub.s32 1, %s8
  %s11 = scalar_select 0, %s10, %s8
  // Predicated region
  $region2: #{tpu_custom_call.1} parent=0 // pred_check
    _
  $region3: #{tpu_custom_call.1} parent=0 // pred_check_branch
    %13 = sbr.rel (0) target = $region5
  $region4: #{tpu_custom_call.1} parent=0 // pred_region
    _
  $region5: #{tpu_custom_call.1} parent=0 // pred_fallthru
    _
  // Predicated region
  $region6: #{tpu_custom_call.1} parent=0 // pred_check
    _
  $region7: #{tpu_custom_call.1} parent=0 // pred_check_branch
    %15 = sbr.rel (0) target = $region9
  $region8: #{tpu_custom_call.1} parent=0 // pred_region
    _
  $region9: #{tpu_custom_call.1} parent=0 // pred_fallthru
    _
  // Predicated region
  $region10: #{tpu_custom_call.1} parent=0 // pred_check
    _
  $region11: #{tpu_custom_call.1} parent=0 // pred_check_branch
    %17 = sbr.rel (0) target = $region13
  $region12: #{tpu_custom_call.1} parent=0 // pred_region
    _
  $region13: #{tpu_custom_call.1} parent=0 // pred_fallthru
    _
  // Predicated region
  $region14: #{tpu_custom_call.1} parent=0 // pred_check
    _
  $region15: #{tpu_custom_call.1} parent=0 // pred_check_branch
    %19 = sbr.rel (0) target = $region17
  $region16: #{tpu_custom_call.1} parent=0 // pred_region
    _
  $region17: #{tpu_custom_call.1} parent=0 // pred_fallthru
    _
  // Predicated region
  $region18: #{tpu_custom_call.1} parent=0 // pred_check
    _
  $region19: #{tpu_custom_call.1} parent=0 // pred_check_branch
    %21 = sbr.rel (0) target = $region21
  $region20: #{tpu_custom_call.1} parent=0 // pred_region
    _
  $region21: #{tpu_custom_call.1} parent=0 // pred_fallthru
    _
  // Predicated region
  $region22: #{tpu_custom_call.1} parent=0 // pred_check
    _
  $region23: #{tpu_custom_call.1} parent=0 // pred_check_branch
    %23 = sbr.rel (0) target = $region25
  $region24: #{tpu_custom_call.1} parent=0 // pred_region
    _
  $region25: #{tpu_custom_call.1} parent=0 // pred_fallthru
    _
  // Predicated region
  $region26: #{tpu_custom_call.1} parent=0 // pred_check
    _
  $region27: #{tpu_custom_call.1} parent=0 // pred_check_branch
    %25 = sbr.rel (0) target = $region29
  $region28: #{tpu_custom_call.1} parent=0 // pred_region
    _
  $region29: #{tpu_custom_call.1} parent=0 // pred_fallthru
    _
  %v27 = vld [vmem:[%s0] sm:$0xff]
  %v28 = vpack.c.bf16 %v27, %v27
  %v29 = vld [vmem:[%s1] sm:$0x3]
  %v30 = vld [vmem:[%s2] sm:$0x1]
  %v32 = vperm.slane %v30, 0
  %vm34 = vcmask 31744
  %v36 = vsel %vm34, %v28, 0
  %vm38 = vcmask 1041408
  %v40 = vsel %vm38, %v29, 0
  %42 = vmatpush.bf16.msra.mxu0 0
  %43 = vmatpush.bf16.msra.mxu0 0
  %44 = vmatpush.bf16.msra.mxu0 0
  %45 = vmatpush.bf16.msra.mxu0 0
  %46 = vmatpush.bf16.msra.mxu0 0
  %47 = vmatpush.bf16.msra.mxu0 0
  %48 = vmatpush.bf16.msra.mxu0 0
  %49 = vmatpush.bf16.msra.mxu0 %v40
  %50 = vmatmul.bf16.gmra.mxu0 %v36
  %v51 = vpop.f32.mrf.mxu0
  %v52 = vadd.f32 %v32, %v51
  %v53 = vpop.f32.mrf.mxu0
  %54 = vdwg.mxu0
  %v55 = vtanh.pop %v52
  %v56 = vpack.c.bf16 %v55, %v55
  %v57 = vld [vmem:[%s3] sm:$0xf]
  %v58 = vld [vmem:[%s3 + $0x4] sm:$0xf]
  %v59 = vld [vmem:[%s3 + $0x8] sm:$0xf]
  %v60 = vld [vmem:[%s3 + $0xc] sm:$0xf]
  %v61 = vld [vmem:[%s3 + $0x10] sm:$0xf]
  %v62 = vld [vmem:[%s3 + $0x14] sm:$0xf]
  %v63 = vld [vmem:[%s3 + $0x18] sm:$0xf]
  %v64 = vld [vmem:[%s3 + $0x1c] sm:$0xf]
  %v65 = vld [vmem:[%s3 + $0x20] sm:$0xf]
  %v66 = vld [vmem:[%s3 + $0x24] sm:$0xf]
  %v67 = vld [vmem:[%s3 + $0x28] sm:$0xf]
  %v68 = vld [vmem:[%s3 + $0x2c] sm:$0xf]
  %v69 = vld [vmem:[%s3 + $0x30] sm:$0xf]
  %v70 = vld [vmem:[%s3 + $0x34] sm:$0xf]
  %v71 = vld [vmem:[%s3 + $0x38] sm:$0xf]
  %v72 = vld [vmem:[%s3 + $0x3c] sm:$0xf]
  %v73 = vld [vmem:[%s4] sm:$0x1]
  %v75 = vperm.slane %v73, 0
  %v93 = vunpack.c.l.b16 %v57
  %v94 = vunpack.c.l.b16 %v58
  %v95 = vunpack.c.l.b16 %v59
  %v96 = vunpack.c.l.b16 %v60
  %v97 = vunpack.c.l.b16 %v61
  %v98 = vunpack.c.l.b16 %v62
  %v99 = vunpack.c.l.b16 %v63
  %v100 = vunpack.c.l.b16 %v64
  %v101 = vunpack.c.l.b16 %v65
  %v102 = vunpack.c.l.b16 %v66
  %v103 = vunpack.c.l.b16 %v67
  %v104 = vunpack.c.l.b16 %v68
  %v105 = vunpack.c.l.b16 %v69
  %v106 = vunpack.c.l.b16 %v70
  %v107 = vunpack.c.l.b16 %v71
  %v108 = vunpack.c.l.b16 %v72
  %v109 = vpack.c.b16 %v94, %v93
  %v110 = vpack.c.b16 %v96, %v95
  %v111 = vpack.c.b16 %v98, %v97
  %v112 = vpack.c.b16 %v100, %v99
  %v113 = vpack.c.b16 %v102, %v101
  %v114 = vpack.c.b16 %v104, %v103
  %v115 = vpack.c.b16 %v106, %v105
  %v116 = vpack.c.b16 %v108, %v107
  %125 = vmatpush.bf16.msra.mxu0 %v116
  %126 = vmatpush.bf16.msra.mxu0 %v115
  %127 = vmatpush.bf16.msra.mxu0 %v114
  %128 = vmatpush.bf16.msra.mxu0 %v113
  %129 = vmatpush.bf16.msra.mxu0 %v112
  %130 = vmatpush.bf16.msra.mxu0 %v111
  %131 = vmatpush.bf16.msra.mxu0 %v110
  %132 = vmatpush.bf16.msra.mxu0 %v109
  %133 = vmatmul.bf16.gmra.mxu0 %v56
  %v134 = vpop.f32.mrf.mxu0
  %v135 = vadd.f32 %v75, %v134
  %v136 = vpop.f32.mrf.mxu0
  %137 = vdwg.mxu0
  %v138 = vtanh.pop %v135
  %v139 = vpack.c.bf16 %v138, %v138
  %v140 = vld [vmem:[%s5] sm:$0xf]
  %v141 = vld [vmem:[%s5 + $0x4] sm:$0xf]
  %v142 = vld [vmem:[%s5 + $0x8] sm:$0xf]
  %v143 = vld [vmem:[%s5 + $0xc] sm:$0xf]
  %v144 = vld [vmem:[%s5 + $0x10] sm:$0xf]
  %v145 = vld [vmem:[%s5 + $0x14] sm:$0xf]
  %v146 = vld [vmem:[%s5 + $0x18] sm:$0xf]
  %v147 = vld [vmem:[%s5 + $0x1c] sm:$0xf]
  %v148 = vld [vmem:[%s5 + $0x20] sm:$0xf]
  %v149 = vld [vmem:[%s5 + $0x24] sm:$0xf]
  %v150 = vld [vmem:[%s5 + $0x28] sm:$0xf]
  %v151 = vld [vmem:[%s5 + $0x2c] sm:$0xf]
  %v152 = vld [vmem:[%s5 + $0x30] sm:$0xf]
  %v153 = vld [vmem:[%s5 + $0x34] sm:$0xf]
  %v154 = vld [vmem:[%s5 + $0x38] sm:$0xf]
  %v155 = vld [vmem:[%s5 + $0x3c] sm:$0xf]
  %v156 = vld [vmem:[%s6] sm:$0x1]
  %v158 = vperm.slane %v156, 0
  %v176 = vunpack.c.l.b16 %v140
  %v177 = vunpack.c.l.b16 %v141
  %v178 = vunpack.c.l.b16 %v142
  %v179 = vunpack.c.l.b16 %v143
  %v180 = vunpack.c.l.b16 %v144
  %v181 = vunpack.c.l.b16 %v145
  %v182 = vunpack.c.l.b16 %v146
  %v183 = vunpack.c.l.b16 %v147
  %v184 = vunpack.c.l.b16 %v148
  %v185 = vunpack.c.l.b16 %v149
  %v186 = vunpack.c.l.b16 %v150
  %v187 = vunpack.c.l.b16 %v151
  %v188 = vunpack.c.l.b16 %v152
  %v189 = vunpack.c.l.b16 %v153
  %v190 = vunpack.c.l.b16 %v154
  %v191 = vunpack.c.l.b16 %v155
  %v192 = vpack.c.b16 %v177, %v176
  %v193 = vpack.c.b16 %v179, %v178
  %v194 = vpack.c.b16 %v181, %v180
  %v195 = vpack.c.b16 %v183, %v182
  %v196 = vpack.c.b16 %v185, %v184
  %v197 = vpack.c.b16 %v187, %v186
  %v198 = vpack.c.b16 %v189, %v188
  %v199 = vpack.c.b16 %v191, %v190
  %208 = vmatpush.bf16.msra.mxu0 %v199
  %209 = vmatpush.bf16.msra.mxu0 %v198
  %210 = vmatpush.bf16.msra.mxu0 %v197
  %211 = vmatpush.bf16.msra.mxu0 %v196
  %212 = vmatpush.bf16.msra.mxu0 %v195
  %213 = vmatpush.bf16.msra.mxu0 %v194
  %214 = vmatpush.bf16.msra.mxu0 %v193
  %215 = vmatpush.bf16.msra.mxu0 %v192
  %216 = vmatmul.bf16.gmra.mxu0 %v139
  %v217 = vpop.f32.mrf.mxu0
  %v218 = vadd.f32 %v158, %v217
  %v219 = vpop.f32.mrf.mxu0
  %220 = vdwg.mxu0
  %221 = vst.msk [vmem:[%s7] sm:$0xff] %vm34, %v218
  // Predicated region
  $region30: #{tpu_custom_call.1} parent=0 // pred_check
    _
  $region31: #{tpu_custom_call.1} parent=0 // pred_check_branch
    %223 = sbr.rel (0) target = $region33
  $region32: #{tpu_custom_call.1} parent=0 // pred_region
    _
  $region33: #{tpu_custom_call.1} parent=0 // pred_fallthru
    _
  // Predicated region
  $region34: #{tpu_custom_call.1} parent=0 // pred_check
    _
  $region35: #{tpu_custom_call.1} parent=0 // pred_check_branch
    %225 = sbr.rel (0) target = $region37
  $region36: #{tpu_custom_call.1} parent=0 // pred_region
    _
  $region37: #{tpu_custom_call.1} parent=0 // pred_fallthru
    _

</llo_original>
